<compile_context>
chip_gen: v6e
topology: v6e:2x2x1
jax: 0.10.0
libtpu: 0.0.40
codegen_flags: <defaults>
</compile_context>

<pallas_src>
import functools

import jax
import jax.numpy as jnp
from jax.experimental import pallas as pl
from jax.experimental.pallas import tpu as pltpu


def ddpm_schedules(beta1, beta2, T):
    """JAX port of the PyTorch schedule precompute (same math, same dtypes)."""
    assert beta1 < beta2 < 1.0, "beta1 and beta2 must be in (0, 1)"
    beta_t = (beta2 - beta1) * jnp.arange(0, T + 1, dtype=jnp.float32) / T + beta1
    sqrt_beta_t = jnp.sqrt(beta_t)
    alpha_t = 1.0 - beta_t
    log_alpha_t = jnp.log(alpha_t)
    alphabar_t = jnp.exp(jnp.cumsum(log_alpha_t, axis=0))
    sqrtab = jnp.sqrt(alphabar_t)
    oneover_sqrta = 1.0 / jnp.sqrt(alpha_t)
    sqrtmab = jnp.sqrt(1.0 - alphabar_t)
    mab_over_sqrtmab_inv = (1.0 - alpha_t) / sqrtmab
    return {
        "alpha_t": alpha_t,
        "oneover_sqrta": oneover_sqrta,
        "sqrt_beta_t": sqrt_beta_t,
        "alphabar_t": alphabar_t,
        "sqrtab": sqrtab,
        "sqrtmab": sqrtmab,
        "mab_over_sqrtmab": mab_over_sqrtmab_inv,
    }


def _round_up(n, m):
    return ((n + m - 1) // m) * m


def ddpm_forward_kernel(pack_ref, w1c_ref, vecs_ref, out_ref, *, n_rows, ctx_dim):
    """One batch block: per-block partial sum of squared error.

    pack columns: [x, noise, context_mask, sqrtab[t], sqrtmab[t], t/n_T, c_0..c_{D-1}]
    vecs rows   : [w1x, w1t, b1, w2^T, b2 (broadcast)]
    """
    TB = pack_ref.shape[0]

    x = pack_ref[:, 0:1]
    noise = pack_ref[:, 1:2]
    mask = pack_ref[:, 2:3]
    sa = pack_ref[:, 3:4]
    sm = pack_ref[:, 4:5]
    tnorm = pack_ref[:, 5:6]
    c = pack_ref[:, 6:6 + ctx_dim]

    # 1) forward diffusion noising:  x_t = sqrtab[t] * x + sqrtmab[t] * noise
    x_t = sa * x + sm * noise                                   # (TB, 1)

    # 2) classifier-free-guidance context dropout:  c * (1 - context_mask)
    c_masked = c * (1.0 - mask)                                 # (TB, D)

    # 3) nn_model (2-layer MLP).  Only the (TB,D)@(D,H) block hits the MXU;
    #    the rank-1 pieces of the concat-matmul are VPU broadcast multiplies.
    w1x_row = vecs_ref[0:1, :]                                  # (1, H)
    w1t_row = vecs_ref[1:2, :]
    b1_row = vecs_ref[2:3, :]
    w2t_row = vecs_ref[3:4, :]
    b2 = vecs_ref[4:5, 0:1]                                     # (1, 1)

    h = (jnp.dot(c_masked, w1c_ref[...], preferred_element_type=jnp.float32)
         + x_t * w1x_row + tnorm * w1t_row + b1_row)            # (TB, H)
    h = jnp.maximum(h, 0.0)
    # (TB,H)@(H,1) as a VPU multiply + lane reduce (no N=1 MXU pass).
    eps_pred = jnp.sum(h * w2t_row, axis=-1, keepdims=True) + b2

    # 4) partial SSE for MSELoss, masking padded batch rows of the last block.
    row = pl.program_id(0) * TB + jax.lax.broadcasted_iota(jnp.int32, (TB, 1), 0)
    valid = (row < n_rows).astype(jnp.float32)
    diff = (noise - eps_pred) * valid
    out_ref[...] = jnp.broadcast_to(jnp.sum(diff * diff), out_ref.shape)


def ddpm_forward(x, c, params, schedules, key, *, n_T, drop_prob=0.1,
                 is_test=False, tb_rows=4096):
    """Mirrors DDPM.forward: samples t, noise, context_mask; returns scalar MSE loss."""
    if x.ndim == 1:
        x = x[:, None]
    B = x.shape[0]
    D = c.shape[1]
    k_t, k_n, k_m = jax.random.split(key, 3)

    _ts = jax.random.randint(k_t, (B,), 1, n_T + 1)               # t ~ U{1..n_T}
    noise = jax.random.normal(k_n, x.shape, dtype=x.dtype)        # eps ~ N(0,1)
    if is_test:
        mask = jnp.zeros((B,), dtype=jnp.float32)
    else:
        mask = jax.random.bernoulli(k_m, drop_prob, (B,)).astype(jnp.float32)

    # schedule gather stays in XLA (fuses into the concat under jit)
    sa = schedules["sqrtab"][_ts][:, None].astype(jnp.float32)
    sm = schedules["sqrtmab"][_ts][:, None].astype(jnp.float32)
    tnorm = (_ts.astype(jnp.float32) / n_T)[:, None]

    # lane-packed per-sample block: [x, noise, mask, sa, sm, tnorm, c...]
    pack = jnp.concatenate(
        [x.astype(jnp.float32), noise.astype(jnp.float32), mask[:, None],
         sa, sm, tnorm, c.astype(jnp.float32)], axis=-1)          # (B, 6+D)
    width = pack.shape[1]

    # batch grid: big blocks (multiple of 8 sublanes), padded rows masked in-kernel
    TB = min(tb_rows, _round_up(B, 8))
    B_pad = _round_up(B, TB)
    if B_pad != B:
        pack = jnp.pad(pack, ((0, B_pad - B), (0, 0)))
    num_blocks = B_pad // TB

    w1x, w1c, w1t, b1, w2, b2 = params
    H = w1c.shape[1]
    # rows = [w1x, w1t, b1, w2^T, b2]  (all length-H)
    vecs = jnp.concatenate(
        [w1x.reshape(1, -1), w1t.reshape(1, -1), b1.reshape(1, -1),
         w2.reshape(1, -1), jnp.full((1, H), b2.reshape(()))],
        axis=0).astype(jnp.float32)                               # (5, H)

    kernel = functools.partial(ddpm_forward_kernel, n_rows=B, ctx_dim=D)

    partials = pl.pallas_call(
        kernel,
        out_shape=jax.ShapeDtypeStruct((num_blocks * 8, 128), jnp.float32),
        grid=(num_blocks,),
        in_specs=[
            pl.BlockSpec((TB, width), lambda i: (i, 0)),
            pl.BlockSpec((w1c.shape[0], H), lambda i: (0, 0)),
            pl.BlockSpec((5, H), lambda i: (0, 0)),
        ],
        out_specs=pl.BlockSpec((8, 128), lambda i: (i, 0)),
        compiler_params=pltpu.CompilerParams(
            dimension_semantics=("parallel",)),
    )(pack, w1c.astype(jnp.float32), vecs)

    # each block broadcast its partial SSE over its (8,128) tile; pick one per block
    loss = jnp.sum(partials[0::8, 0]) / x.size                    # MSE, mean reduction
    return loss


if __name__ == "__main__":
    B, D, H = 8, 8, 32          # batch, context features, MLP hidden width
    n_T = 400
    betas = (1e-4, 0.02)
    drop_prob = 0.1

    key = jax.random.PRNGKey(0)
    kx, kc, kw1, kw2, krun = jax.random.split(key, 5)

    # inputs (x: targets, c: conditioning features), as in the module docstring
    x = jax.random.normal(kx, (B, 1), dtype=jnp.float32)
    c = jax.random.normal(kc, (B, D), dtype=jnp.float32)

    # deterministic synthetic nn_model parameters: first layer rows ordered as
    # [x_t | c | t] so the in-kernel "concat" is one matmul + two broadcast muls.
    scale1 = 1.0 / jnp.sqrt(jnp.float32(1 + D + 1))
    w1 = jax.random.normal(kw1, (1 + D + 1, H), dtype=jnp.float32) * scale1
    w1x, w1c, w1t = w1[0:1, :], w1[1:1 + D, :], w1[1 + D:, :]
    b1 = jnp.zeros((1, H), dtype=jnp.float32)
    w2 = jax.random.normal(kw2, (H, 1), dtype=jnp.float32) / jnp.sqrt(jnp.float32(H))
    b2 = jnp.zeros((1, 1), dtype=jnp.float32)
    params = (w1x, w1c, w1t, b1, w2, b2)

    schedules = ddpm_schedules(betas[0], betas[1], n_T)

    fwd = jax.jit(functools.partial(ddpm_forward, n_T=n_T, drop_prob=drop_prob))
    loss = fwd(x, c, params, schedules, krun)
    jax.block_until_ready(loss)

    # reference check in plain JAX (same RNG draws) to make sure the kernel math matches
    k_t, k_n, k_m = jax.random.split(krun, 3)
    _ts = jax.random.randint(k_t, (B,), 1, n_T + 1)
    noise = jax.random.normal(k_n, (B, 1), dtype=jnp.float32)
    mask = jax.random.bernoulli(k_m, drop_prob, (B,)).astype(jnp.float32)
    x_t = schedules["sqrtab"][_ts][:, None] * x + schedules["sqrtmab"][_ts][:, None] * noise
    feat = jnp.concatenate([x_t, c * (1.0 - mask)[:, None],
                            (_ts.astype(jnp.float32) / n_T)[:, None]], axis=-1)
    eps_ref = jnp.maximum(feat @ w1 + b1, 0.0) @ w2 + b2
    loss_ref = jnp.mean((noise - eps_ref) ** 2)
    assert jnp.allclose(loss, loss_ref, rtol=1e-5, atol=1e-5), (loss, loss_ref)

    print("KERNEL_OK")
</pallas_src>

<mosaic_0001>
module attributes {stable_mosaic.version = 11 : i64} {
  func.func @ddpm_forward_kernel(%arg0: i32, %arg1: memref<8x14xf32, #tpu.memory_space<vmem>>, %arg2: memref<8x32xf32, #tpu.memory_space<vmem>>, %arg3: memref<5x32xf32, #tpu.memory_space<vmem>>, %arg4: memref<8x128xf32, #tpu.memory_space<vmem>>) attributes {dimension_semantics = [#tpu.dimension_semantics<parallel>], iteration_bounds = array<i64: 1>, scalar_prefetch = 0 : i64, scratch_operands = 0 : i64, tpu.core_type = #tpu.core_type<tc>, window_params = [{transform_indices = @transform_0, window_bounds = array<i64: 8, 14>}, {pipeline_mode = #tpu.pipeline_mode<synchronous>, transform_indices = @transform_1, window_bounds = array<i64: 8, 32>}, {pipeline_mode = #tpu.pipeline_mode<synchronous>, transform_indices = @transform_2, window_bounds = array<i64: 5, 32>}, {transform_indices = @transform_3, window_bounds = array<i64: 8, 128>}]} {
    %c0 = arith.constant 0 : index
    %c0_0 = arith.constant 0 : index
    %0 = vector.load %arg1[%c0, %c0_0] : memref<8x14xf32, #tpu.memory_space<vmem>>, vector<8x1xf32>
    %c0_1 = arith.constant 0 : index
    %c1 = arith.constant 1 : index
    %1 = vector.load %arg1[%c0_1, %c1] : memref<8x14xf32, #tpu.memory_space<vmem>>, vector<8x1xf32>
    %c0_2 = arith.constant 0 : index
    %c2 = arith.constant 2 : index
    %2 = vector.load %arg1[%c0_2, %c2] : memref<8x14xf32, #tpu.memory_space<vmem>>, vector<8x1xf32>
    %c0_3 = arith.constant 0 : index
    %c3 = arith.constant 3 : index
    %3 = vector.load %arg1[%c0_3, %c3] : memref<8x14xf32, #tpu.memory_space<vmem>>, vector<8x1xf32>
    %c0_4 = arith.constant 0 : index
    %c4 = arith.constant 4 : index
    %4 = vector.load %arg1[%c0_4, %c4] : memref<8x14xf32, #tpu.memory_space<vmem>>, vector<8x1xf32>
    %c0_5 = arith.constant 0 : index
    %c5 = arith.constant 5 : index
    %5 = vector.load %arg1[%c0_5, %c5] : memref<8x14xf32, #tpu.memory_space<vmem>>, vector<8x1xf32>
    %c0_6 = arith.constant 0 : index
    %c6 = arith.constant 6 : index
    %6 = vector.load %arg1[%c0_6, %c6] : memref<8x14xf32, #tpu.memory_space<vmem>>, vector<8x8xf32>
    %7 = arith.mulf %3, %0 : vector<8x1xf32>
    %8 = arith.mulf %4, %1 : vector<8x1xf32>
    %9 = arith.addf %7, %8 : vector<8x1xf32>
    %cst = arith.constant 1.000000e+00 : f32
    %10 = vector.broadcast %cst : f32 to vector<8x1xf32>
    %11 = arith.subf %10, %2 : vector<8x1xf32>
    %12 = vector.broadcast %11 : vector<8x1xf32> to vector<8x8xf32>
    %13 = arith.mulf %6, %12 : vector<8x8xf32>
    %c0_7 = arith.constant 0 : index
    %c0_8 = arith.constant 0 : index
    %14 = vector.load %arg3[%c0_7, %c0_8] : memref<5x32xf32, #tpu.memory_space<vmem>>, vector<1x32xf32>
    %c1_9 = arith.constant 1 : index
    %c0_10 = arith.constant 0 : index
    %15 = vector.load %arg3[%c1_9, %c0_10] : memref<5x32xf32, #tpu.memory_space<vmem>>, vector<1x32xf32>
    %c2_11 = arith.constant 2 : index
    %c0_12 = arith.constant 0 : index
    %16 = vector.load %arg3[%c2_11, %c0_12] : memref<5x32xf32, #tpu.memory_space<vmem>>, vector<1x32xf32>
    %c3_13 = arith.constant 3 : index
    %c0_14 = arith.constant 0 : index
    %17 = vector.load %arg3[%c3_13, %c0_14] : memref<5x32xf32, #tpu.memory_space<vmem>>, vector<1x32xf32>
    %c4_15 = arith.constant 4 : index
    %c0_16 = arith.constant 0 : index
    %18 = vector.load %arg3[%c4_15, %c0_16] : memref<5x32xf32, #tpu.memory_space<vmem>>, vector<1x1xf32>
    %c0_17 = arith.constant 0 : index
    %c0_18 = arith.constant 0 : index
    %19 = vector.load %arg2[%c0_17, %c0_18] : memref<8x32xf32, #tpu.memory_space<vmem>>, vector<8x32xf32>
    %cst_19 = arith.constant dense<0.000000e+00> : vector<8x32xf32>
    %20 = tpu.matmul %13, %19, %cst_19 {dimension_numbers = #tpu.dot_dimension_numbers<[1], [0], [0], [1], [0, 0, 1, 1], [], []>} : vector<8x8xf32>, vector<8x32xf32>, vector<8x32xf32> -> vector<8x32xf32>
    %21 = vector.broadcast %9 : vector<8x1xf32> to vector<8x32xf32>
    %22 = vector.broadcast %14 : vector<1x32xf32> to vector<8x32xf32>
    %23 = arith.mulf %21, %22 : vector<8x32xf32>
    %24 = arith.addf %20, %23 : vector<8x32xf32>
    %25 = vector.broadcast %5 : vector<8x1xf32> to vector<8x32xf32>
    %26 = vector.broadcast %15 : vector<1x32xf32> to vector<8x32xf32>
    %27 = arith.mulf %25, %26 : vector<8x32xf32>
    %28 = arith.addf %24, %27 : vector<8x32xf32>
    %29 = vector.broadcast %16 : vector<1x32xf32> to vector<8x32xf32>
    %30 = arith.addf %28, %29 : vector<8x32xf32>
    %cst_20 = arith.constant 0.000000e+00 : f32
    %31 = vector.broadcast %cst_20 : f32 to vector<8x32xf32>
    %32 = arith.maximumf %30, %31 : vector<8x32xf32>
    %33 = vector.broadcast %17 : vector<1x32xf32> to vector<8x32xf32>
    %34 = arith.mulf %32, %33 : vector<8x32xf32>
    %cst_21 = arith.constant dense<0.000000e+00> : vector<8xf32>
    %35 = vector.multi_reduction <add>, %34, %cst_21 [1] : vector<8x32xf32> to vector<8xf32>
    %36 = vector.shape_cast %35 : vector<8xf32> to vector<8x1xf32>
    %37 = vector.broadcast %18 : vector<1x1xf32> to vector<8x1xf32>
    %38 = arith.addf %36, %37 : vector<8x1xf32>
    %c8_i32 = arith.constant 8 : i32
    %39 = arith.muli %arg0, %c8_i32 : i32
    %40 = tpu.iota {dimensions = array<i32: 0>} : vector<8x1xi32>
    %41 = vector.broadcast %39 : i32 to vector<8x1xi32>
    %42 = arith.addi %41, %40 : vector<8x1xi32>
    %c8_i32_22 = arith.constant 8 : i32
    %43 = vector.broadcast %c8_i32_22 : i32 to vector<8x1xi32>
    %44 = arith.cmpi slt, %42, %43 : vector<8x1xi32>
    %45 = arith.extui %44 : vector<8x1xi1> to vector<8x1xi32>
    %46 = arith.sitofp %45 : vector<8x1xi32> to vector<8x1xf32>
    %47 = arith.subf %1, %38 : vector<8x1xf32>
    %48 = arith.mulf %47, %46 : vector<8x1xf32>
    %49 = arith.mulf %48, %48 : vector<8x1xf32>
    %50 = vector.shape_cast %49 : vector<8x1xf32> to vector<1x8x1xf32>
    %cst_23 = arith.constant dense<0.000000e+00> : vector<1xf32>
    %51 = vector.multi_reduction <add>, %50, %cst_23 [1, 2] : vector<1x8x1xf32> to vector<1xf32>
    %52 = vector.shape_cast %51 : vector<1xf32> to vector<1x1x1xf32>
    %53 = vector.extract %52[0, 0, 0] : f32 from vector<1x1x1xf32>
    %54 = vector.broadcast %53 : f32 to vector<8x128xf32>
    %c0_24 = arith.constant 0 : index
    %c0_25 = arith.constant 0 : index
    %55 = vector.load %arg4[%c0_24, %c0_25] : memref<8x128xf32, #tpu.memory_space<vmem>>, vector<8x128xf32>
    tpu.vector_store %arg4[%c0_24, %c0_25], %54 {strides = array<i32>} : memref<8x128xf32, #tpu.memory_space<vmem>>, vector<8x128xf32>,
    return
  }
  func.func @transform_0(%arg0: i32) -> (i32, i32) {
    %c0_i32 = arith.constant 0 : i32
    %c0_i32_0 = arith.constant 0 : i32
    return %arg0, %c0_i32 : i32, i32
  }
  func.func @transform_1(%arg0: i32) -> (i32, i32) {
    %c0_i32 = arith.constant 0 : i32
    %c0_i32_0 = arith.constant 0 : i32
    %c0_i32_1 = arith.constant 0 : i32
    return %c0_i32, %c0_i32_0 : i32, i32
  }
  func.func @transform_2(%arg0: i32) -> (i32, i32) {
    %c0_i32 = arith.constant 0 : i32
    %c0_i32_0 = arith.constant 0 : i32
    %c0_i32_1 = arith.constant 0 : i32
    return %c0_i32, %c0_i32_0 : i32, i32
  }
  func.func @transform_3(%arg0: i32) -> (i32, i32) {
    %c0_i32 = arith.constant 0 : i32
    %c0_i32_0 = arith.constant 0 : i32
    return %arg0, %c0_i32 : i32, i32
  }
}

</mosaic_0001>

<llo_original>
// kernel: ddpm_forward.3
$region0: #{ddpm_forward.3}
  #allocation0 [shape = 'u32[]', space=smem, size = 0x4, offset = 0x4, fixed_abs, tag = 'smem constant byte address 0x4 - core index']
  #allocation1 [shape = 'u32[144,128]{1,0:T(1,128)}', space=vmem, size = 0x12000, scoped, tag = 'internal scratch']
  %s0 = inlined_call_operand.vmem [shape: f32[8,14], index: 0, kind: input, shape index: {}]
  %s1 = inlined_call_operand.vmem [shape: f32[8,32], index: 1, kind: input, shape index: {}]
  %s2 = inlined_call_operand.vmem [shape: f32[5,32], index: 2, kind: input, shape index: {}]
  %s3 = inlined_call_operand.vmem [shape: f32[8,128], index: 3, kind: output, shape index: {}]
  %s4 = sld [smem:[#allocation0]]
  $region22: #{ddpm_forward.3} parent=0
    _
  %s6 = ssub.s32 1, %s4
  %s7 = scalar_select 0, %s6, %s4
  // Predicated region
  $region2: #{ddpm_forward.3} parent=0 // pred_check
    _
  $region3: #{ddpm_forward.3} parent=0 // pred_check_branch
    %9 = sbr.rel (0) target = $region5
  $region4: #{ddpm_forward.3} parent=0 // pred_region
    _
  $region5: #{ddpm_forward.3} parent=0 // pred_fallthru
    _
  // Predicated region
  $region6: #{ddpm_forward.3} parent=0 // pred_check
    _
  $region7: #{ddpm_forward.3} parent=0 // pred_check_branch
    %11 = sbr.rel (0) target = $region9
  $region8: #{ddpm_forward.3} parent=0 // pred_region
    _
  $region9: #{ddpm_forward.3} parent=0 // pred_fallthru
    _
  // Predicated region
  $region10: #{ddpm_forward.3} parent=0 // pred_check
    _
  $region11: #{ddpm_forward.3} parent=0 // pred_check_branch
    %13 = sbr.rel (0) target = $region13
  $region12: #{ddpm_forward.3} parent=0 // pred_region
    _
  $region13: #{ddpm_forward.3} parent=0 // pred_fallthru
    _
  %v14 = vld [vmem:[%s0] sm:$0xff]
  %16 = vrot.lane.b32.xlu0 %v14, 3
  %v17 = vpop.permute.xlu0 %16
  %v19 = vmul.f32 %v14, %v17
  %21 = vrot.lane.b32.xlu0 %v19, 127
  %v22 = vpop.permute.xlu0 %21
  %v24 = vadd.f32 %v19, %v22
  %v25 = vsub.f32 1.0, %v14
  %27 = vset.pattern.permute.xlu0 2
  %28 = vperm.xlu0 %27, %v25
  %v29 = vpop.permute.xlu0 %28
  %v31 = vmul.f32 %v14, %v29
  %v32 = vld [vmem:[%s2] sm:$0x1]
  %v33 = vld [vmem:[%s2 + $0x1] sm:$0x1]
  %v34 = vld [vmem:[%s2 + $0x2] sm:$0x1]
  %v35 = vld [vmem:[%s2 + $0x3] sm:$0x1]
  %v36 = vld [vmem:[%s2 + $0x4] sm:$0x1]
  %v37 = vld [vmem:[%s1] sm:$0xff]
  %39 = vset.pattern.permute.xlu0 3
  %40 = vperm.xlu0 %39, %v24
  %v41 = vpop.permute.xlu0 %40
  %v43 = vlaneseq
  %v44 = vshrl.u32 %v43, 7
  %v45 = vsub.s32 0, %v44
  %v46 = vrot.slane %v32, %v45
  %v47 = vmul.f32 %v41, %v46
  %49 = vrot.lane.b32.xlu0 %v31, 122
  %v50 = vpop.permute.xlu0 %49
  %vm51 = vcmask 64512
  %v52 = vsel %vm51, %v50, 0
  %54 = vmatprep.subr.mxu0 0.0
  %55 = vmatpush1.msra.mxu0 0.0
  %56 = vmatprep.subr.mxu0 0.0
  %57 = vmatpush1.msra.mxu0 0.0
  %58 = vmatprep.subr.mxu0 0.0
  %59 = vmatpush1.msra.mxu0 0.0
  %60 = vmatprep.subr.mxu0 0.0
  %61 = vmatpush1.msra.mxu0 0.0
  %62 = vmatprep.subr.mxu0 0.0
  %63 = vmatpush1.msra.mxu0 0.0
  %64 = vmatprep.subr.mxu0 0.0
  %65 = vmatpush1.msra.mxu0 0.0
  %66 = vmatprep.subr.mxu0 0.0
  %67 = vmatpush1.msra.mxu0 0.0
  %68 = vmatprep.subr.mxu0 0.0
  %69 = vmatpush1.msra.mxu0 0.0
  %70 = vmatprep.subr.mxu0 0.0
  %71 = vmatpush1.msra.mxu0 0.0
  %72 = vmatprep.subr.mxu0 0.0
  %73 = vmatpush1.msra.mxu0 0.0
  %74 = vmatprep.subr.mxu0 0.0
  %75 = vmatpush1.msra.mxu0 0.0
  %76 = vmatprep.subr.mxu0 0.0
  %77 = vmatpush1.msra.mxu0 0.0
  %78 = vmatprep.subr.mxu0 0.0
  %79 = vmatpush1.msra.mxu0 0.0
  %80 = vmatprep.subr.mxu0 0.0
  %81 = vmatpush1.msra.mxu0 0.0
  %82 = vmatprep.subr.mxu0 0.0
  %83 = vmatpush1.msra.mxu0 0.0
  %84 = vmatprep.subr.mxu0 0.0
  %85 = vmatpush1.msra.mxu0 %v37
  %86 = vmatprep.subr.mxu0 0.0
  %87 = vmatpush2.msra.mxu0 0.0
  %88 = vmatprep.subr.mxu0 0.0
  %89 = vmatpush2.msra.mxu0 0.0
  %90 = vmatprep.subr.mxu0 0.0
  %91 = vmatpush2.msra.mxu0 0.0
  %92 = vmatprep.subr.mxu0 0.0
  %93 = vmatpush2.msra.mxu0 0.0
  %94 = vmatprep.subr.mxu0 0.0
  %95 = vmatpush2.msra.mxu0 0.0
  %96 = vmatprep.subr.mxu0 0.0
  %97 = vmatpush2.msra.mxu0 0.0
  %98 = vmatprep.subr.mxu0 0.0
  %99 = vmatpush2.msra.mxu0 0.0
  %100 = vmatprep.subr.mxu0 0.0
  %101 = vmatpush2.msra.mxu0 0.0
  %102 = vmatprep.subr.mxu0 0.0
  %103 = vmatpush2.msra.mxu0 0.0
  %104 = vmatprep.subr.mxu0 0.0
  %105 = vmatpush2.msra.mxu0 0.0
  %106 = vmatprep.subr.mxu0 0.0
  %107 = vmatpush2.msra.mxu0 0.0
  %108 = vmatprep.subr.mxu0 0.0
  %109 = vmatpush2.msra.mxu0 0.0
  %110 = vmatprep.subr.mxu0 0.0
  %111 = vmatpush2.msra.mxu0 0.0
  %112 = vmatprep.subr.mxu0 0.0
  %113 = vmatpush2.msra.mxu0 0.0
  %114 = vmatprep.subr.mxu0 0.0
  %115 = vmatpush2.msra.mxu0 0.0
  %116 = vmatprep.subr.mxu0 0.0
  %117 = vmatpush2.msra.mxu0 0.0
  %118 = vmatprep.mubr.f32.mxu0 0.0
  %119 = vmatmul.mubr.f32.gmra.mxu0 %v52
  %v120 = vpop.f32.mrf.mxu0
  %v121 = vadd.f32 %v47, %v120
  %v122 = vpop.f32.mrf.mxu0
  %123 = vdwg.mxu0
  %124 = vset.pattern.permute.xlu0 5
  %125 = vperm.xlu0 %124, %v14
  %v126 = vpop.permute.xlu0 %125
  %v128 = vlaneseq
  %v129 = vshrl.u32 %v128, 7
  %v130 = vsub.s32 0, %v129
  %v131 = vrot.slane %v33, %v130
  %v132 = vmul.f32 %v126, %v131
  %v133 = vadd.f32 %v121, %v132
  %v134 = vlaneseq
  %v135 = vshrl.u32 %v134, 7
  %v136 = vsub.s32 0, %v135
  %v137 = vrot.slane %v34, %v136
  %v138 = vadd.f32 %v133, %v137
  %v139 = vmax.f32 %v138, 0.0
  %v140 = vlaneseq
  %v141 = vshrl.u32 %v140, 7
  %v142 = vsub.s32 0, %v141
  %v143 = vrot.slane %v35, %v142
  %v144 = vmul.f32 %v139, %v143
  %vm145 = vcmask 261120
  %v146 = vsel %vm145, %v144, 0.0
  %147 = vadd.xlane.f32.xlu0 %v146
  %v148 = vpop.xlane.xlu0 %147
  %v149 = vlaneseq
  %v150 = vshrl.u32 %v149, 7
  %v151 = vsub.s32 0, %v150
  %v152 = vrot.slane %v36, %v151
  %v153 = vadd.f32 %v148, %v152
  %s154 = smul.u32 0, 8
  %v155 = vlaneseq
  %v156 = vshrl.u32 %v155, 7
  %v157 = vstv %s154
  %v158 = vadd.s32 %v157, %v156
  %vm159 = vcmp.lt.s32.totalorder %v158, 8
  %v160 = vsel %vm159, 1, 0
  %v161 = vcvt.s32.f32 %v160
  %163 = vrot.lane.b32.xlu0 %v153, 1
  %v164 = vpop.permute.xlu0 %163
  %v166 = vsub.f32 %v14, %v164
  %v167 = vmul.f32 %v166, %v161
  %v168 = vmul.f32 %v167, %v167
  %170 = vrot.lane.b32.xlu0 %v168, 127
  %v171 = vpop.permute.xlu0 %170
  %vm173 = vcmask 7168
  %v174 = vsel %vm173, %v171, 0.0
  %175 = vadd.xlane.f32.xlu0 %v174
  %v176 = vpop.xlane.xlu0 %175
  %v177 = vrot.slane %v176, 4
  %v178 = vadd.f32 %v176, %v177
  %v179 = vrot.slane %v178, 2
  %v180 = vadd.f32 %v178, %v179
  %v181 = vrot.slane %v180, 1
  %v182 = vadd.f32 %v180, %v181
  %s183 = vtos %v182
  %v184 = vstv %s183
  %185 = vst [vmem:[%s3] sm:$0xff] %v184
  // Predicated region
  $region14: #{ddpm_forward.3} parent=0 // pred_check
    _
  $region15: #{ddpm_forward.3} parent=0 // pred_check_branch
    %187 = sbr.rel (0) target = $region17
  $region16: #{ddpm_forward.3} parent=0 // pred_region
    _
  $region17: #{ddpm_forward.3} parent=0 // pred_fallthru
    _
  // Predicated region
  $region18: #{ddpm_forward.3} parent=0 // pred_check
    _
  $region19: #{ddpm_forward.3} parent=0 // pred_check_branch
    %189 = sbr.rel (0) target = $region21
  $region20: #{ddpm_forward.3} parent=0 // pred_region
    _
  $region21: #{ddpm_forward.3} parent=0 // pred_fallthru
    _

</llo_original>
